<compile_context>
chip_gen: v7x
topology: tpu7x:2x2x1
jax: 0.10.0
libtpu: 0.0.40
codegen_flags: <defaults>
</compile_context>

<pallas_src>
import functools

import jax
import jax.numpy as jnp
from jax import lax
from jax.experimental import pallas as pl
from jax.experimental.pallas import tpu as pltpu

_DEFAULTS = {"arcface": (64.0, 0.5), "sphereface": (64.0, 1.35), "cosface": (30.0, 0.4)}
_M_INIT = -1.0e30      # init of the per-lane running max
_MASK_FILL = -2.0e30   # fill for excluded logits; exp(_MASK_FILL - _M_INIT) == 0 exactly


def _round_up(v, mult):
    return ((v + mult - 1) // mult) * mult


def _angular_penalty_kernel(
    xs_ref, w_ref, lab_ref,            # inputs: (n_tile,D) s*x_hat, (D,ct) W, (n_tile,1) labels
    lse_ref, tgt_ref,                  # outputs: per-row neg-LSE, per-row target logit
    m_acc, l_acc, t_acc,               # VMEM scratch, lane-wide (n_tile, 128) f32
    *, class_tile, c_real, needs_class_mask,
):
    ci = pl.program_id(1)
    nc = pl.num_programs(1)

    @pl.when(ci == 0)
    def _init():
        m_acc[...] = jnp.full_like(m_acc, _M_INIT)
        l_acc[...] = jnp.zeros_like(l_acc)
        t_acc[...] = jnp.zeros_like(t_acc)

    # (n_tile, class_tile) = (s * x_hat) @ W_tile — class axis lane-dense, f32 accumulation.
    logits = lax.dot_general(
        xs_ref[...], w_ref[...],
        dimension_numbers=(((1,), (0,)), ((), ())),
        preferred_element_type=jnp.float32,
    )

    n_tile, ct = logits.shape
    col = lax.broadcasted_iota(jnp.int32, (n_tile, ct), 1) + ci * class_tile
    labels = lab_ref[...]                                  # (n_tile, 1) int32
    is_target = col == labels
    neg_mask = jnp.logical_not(is_target)
    if needs_class_mask:                                   # exclude padded classes
        neg_mask = jnp.logical_and(neg_mask, col < c_real)

    masked = jnp.where(neg_mask, logits, _MASK_FILL)       # reused for max AND exp arg
    tgt_part = jnp.where(is_target, logits, 0.0)

    nsub = ct // 128
    # per-lane max over the tile (elementwise only — no XLU in the hot loop)
    tile_max = masked[:, 0:128]
    for j in range(1, nsub):
        tile_max = jnp.maximum(tile_max, masked[:, j * 128:(j + 1) * 128])

    m_old = m_acc[...]
    m_new = jnp.maximum(m_old, tile_max)
    acc = l_acc[...] * jnp.exp(m_old - m_new)              # single (n,128) rescale per tile
    for j in range(nsub):
        acc = acc + jnp.exp(masked[:, j * 128:(j + 1) * 128] - m_new)
    l_acc[...] = acc
    m_acc[...] = m_new

    t = t_acc[...]
    for j in range(nsub):
        t = t + tgt_part[:, j * 128:(j + 1) * 128]
    t_acc[...] = t

    # last class tile for this N-tile: combine lanes (XLU paid once), emit per-row stats.
    @pl.when(ci == nc - 1)
    def _finalize():
        m_lane = m_acc[...]
        m_row = jnp.max(m_lane, axis=1, keepdims=True)
        l_row = jnp.sum(l_acc[...] * jnp.exp(m_lane - m_row), axis=1, keepdims=True)
        lse_ref[...] = m_row + jnp.log(l_row)              # -inf iff zero negatives (C==1)
        tgt_ref[...] = jnp.sum(t_acc[...], axis=1, keepdims=True)


def angular_penalty_sm_loss(x, weight, labels, *, loss_type="arcface",
                            s=None, m=None, eps=1e-7,
                            class_tile=256, n_tile=None,
                            compute_dtype=jnp.bfloat16, vmem_limit_bytes=None):
    """x: (N, D) embeddings, weight: (C, D) = fc.weight, labels: (N,) int.
    Returns the scalar AngularPenaltySMLoss forward value (default: arcface)."""
    loss_type = loss_type.lower()
    assert loss_type in _DEFAULTS
    s_def, m_def = _DEFAULTS[loss_type]
    scale = float(s) if s is not None else s_def
    margin = float(m) if m is not None else m_def

    n, d = x.shape
    c, d2 = weight.shape
    assert d == d2 and labels.shape == (n,)

    compute_dtype = jnp.dtype(compute_dtype)
    sublane = 16 if compute_dtype.itemsize == 2 else 8     # bf16 packs 2 rows / sublane

    # ---- normalize once (same formula as the reference) + fold s into x (free: fuses
    #      with the cast/pad pass; removes one (N, class_tile) multiply per grid step) ----
    xf = x.astype(jnp.float32)
    xn = xf / jnp.maximum(jnp.linalg.norm(xf, axis=1, keepdims=True), 1e-12)
    xs = (scale * xn).astype(compute_dtype)

    d_pad = _round_up(max(d, 128), 128)
    c_pad = _round_up(max(c, class_tile), class_tile)
    n_min = _round_up(max(n, sublane), sublane)
    if n_tile is None:
        n_tile = min(n_min, 512)
    n_tile = _round_up(n_tile, sublane)
    n_pad = _round_up(n_min, n_tile)
    num_n = n_pad // n_tile
    num_c = c_pad // class_tile

    xs_p = jnp.pad(xs, ((0, n_pad - n), (0, d_pad - d)))
    # pre-transpose W once => plain (M,K)x(K,N) matmul, class axis lane-dense (no vxpose)
    w_p = jnp.pad(weight.T.astype(compute_dtype), ((0, d_pad - d), (0, c_pad - c)))
    lab_p = jnp.pad(labels.astype(jnp.int32).reshape(n, 1), ((0, n_pad - n), (0, 0)))

    if vmem_limit_bytes is None:
        isz = compute_dtype.itemsize
        est = (2 * n_tile * d_pad * isz            # x block (double-buffered, fetched once/N-tile)
               + 2 * d_pad * class_tile * isz      # streamed W tile (double-buffered)
               + 2 * n_tile * 128 * 4              # labels block (lane-padded)
               + 3 * n_tile * 128 * 4              # m/l/tgt lane-wide scratch
               + 8 * n_tile * class_tile * 4)      # live (n_tile, class_tile) temporaries
        # cap at 64 MiB so the defaults are safe on v7x; pass a bigger limit on v5e/v6e.
        vmem_limit_bytes = min(64 * 1024 * 1024,
                               max(int(1.5 * est) + (4 << 20), 16 * 1024 * 1024))

    kernel = functools.partial(
        _angular_penalty_kernel,
        class_tile=class_tile, c_real=c, needs_class_mask=(c_pad != c),
    )

    lse_p, tgt_p = pl.pallas_call(
        kernel,
        out_shape=(jax.ShapeDtypeStruct((n_pad, 1), jnp.float32),
                   jax.ShapeDtypeStruct((n_pad, 1), jnp.float32)),
        grid_spec=pltpu.PrefetchScalarGridSpec(
            num_scalar_prefetch=0,
            grid=(num_n, num_c),                              # (parallel, reduction-last)
            in_specs=[
                pl.BlockSpec((n_tile, d_pad), lambda ni, ci: (ni, 0)),       # s * x_hat
                pl.BlockSpec((d_pad, class_tile), lambda ni, ci: (0, ci)),   # W tile (streamed)
                pl.BlockSpec((n_tile, 1), lambda ni, ci: (ni, 0)),           # labels
            ],
            out_specs=[
                pl.BlockSpec((n_tile, 1), lambda ni, ci: (ni, 0)),           # neg-LSE per row
                pl.BlockSpec((n_tile, 1), lambda ni, ci: (ni, 0)),           # target logit per row
            ],
            scratch_shapes=[
                pltpu.VMEM((n_tile, 128), jnp.float32),   # running max (per lane)
                pltpu.VMEM((n_tile, 128), jnp.float32),   # running exp-sum (per lane)
                pltpu.VMEM((n_tile, 128), jnp.float32),   # target logit accumulator
            ],
        ),
        compiler_params=pltpu.CompilerParams(
            dimension_semantics=("parallel", "arbitrary"),
            vmem_limit_bytes=int(vmem_limit_bytes),
        ),
    )(xs_p, w_p, lab_p)

    # ---- tiny O(N) epilogue in plain JAX (keeps arccos out of Mosaic; cosface unclipped
    #      exactly like the PyTorch reference) ----
    lse_neg = lse_p[:n, 0]
    tcos = tgt_p[:n, 0] / scale
    if loss_type == "cosface":
        numerator = scale * (tcos - margin)
    elif loss_type == "arcface":
        numerator = scale * jnp.cos(jnp.arccos(jnp.clip(tcos, -1.0 + eps, 1.0 - eps)) + margin)
    else:  # sphereface
        numerator = scale * jnp.cos(margin * jnp.arccos(jnp.clip(tcos, -1.0 + eps, 1.0 - eps)))
    L = numerator - jnp.logaddexp(numerator, lse_neg)
    return -jnp.mean(L)


def angular_penalty_sm_loss_ref(x, weight, labels, *, loss_type="arcface",
                                s=None, m=None, eps=1e-7):
    """Pure-JAX reference mirroring the PyTorch forward exactly."""
    loss_type = loss_type.lower()
    s_def, m_def = _DEFAULTS[loss_type]
    scale = float(s) if s is not None else s_def
    margin = float(m) if m is not None else m_def

    x = x.astype(jnp.float32)
    w = weight.astype(jnp.float32)
    xn = x / jnp.maximum(jnp.linalg.norm(x, axis=1, keepdims=True), 1e-12)
    wf = xn @ w.T   # the PyTorch weight-normalize loop is a no-op on parameters
    n, c = wf.shape
    tgt = wf[jnp.arange(n), labels]
    if loss_type == "cosface":
        numerator = scale * (tgt - margin)
    elif loss_type == "arcface":
        numerator = scale * jnp.cos(jnp.arccos(jnp.clip(tgt, -1.0 + eps, 1.0 - eps)) + margin)
    else:
        numerator = scale * jnp.cos(margin * jnp.arccos(jnp.clip(tgt, -1.0 + eps, 1.0 - eps)))
    onehot = jax.nn.one_hot(labels, c, dtype=bool)
    excl_sum = jnp.sum(jnp.where(onehot, 0.0, jnp.exp(scale * wf)), axis=1)
    denominator = jnp.exp(numerator) + excl_sum
    L = numerator - jnp.log(denominator)
    return -jnp.mean(L)


if __name__ == "__main__":
    key = jax.random.PRNGKey(0)
    k1, k2, k3 = jax.random.split(key, 3)
    # Small shapes that still exercise multi-tile streaming, class padding and row padding.
    N, D, C = 40, 64, 300            # batch, in_features, out_features
    x = jax.random.normal(k1, (N, D), dtype=jnp.float32)
    weight = jax.random.normal(k2, (C, D), dtype=jnp.float32) / jnp.sqrt(D)
    labels = jax.random.randint(k3, (N,), 0, C, dtype=jnp.int32)

    checks = [
        # (loss_type, compute_dtype, extra kwargs, tolerance)
        ("arcface", jnp.bfloat16, dict(), 2e-2),                              # default fast path
        ("arcface", jnp.float32, dict(class_tile=128, n_tile=16), 1e-3),      # tight validation
        ("cosface", jnp.bfloat16, dict(class_tile=128, n_tile=16), 2e-2),
        ("sphereface", jnp.bfloat16, dict(class_tile=128, n_tile=16), 2e-2),
    ]
    for lt, dt, kw, tol in checks:
        out = jax.block_until_ready(
            angular_penalty_sm_loss(x, weight, labels, loss_type=lt, compute_dtype=dt, **kw))
        ref = jax.block_until_ready(
            angular_penalty_sm_loss_ref(x, weight, labels, loss_type=lt))
        assert jnp.isfinite(out), ("non-finite loss", lt, dt, out)
        assert jnp.allclose(out, ref, rtol=tol, atol=tol), (lt, dt, out, ref)
    print("KERNEL_OK")
</pallas_src>

<mosaic_0001>
module attributes {stable_mosaic.version = 11 : i64} {
  func.func @_angular_penalty_kernel(%arg0: i32, %arg1: i32, %arg2: memref<48x128xbf16, #tpu.memory_space<vmem>>, %arg3: memref<128x256xbf16, #tpu.memory_space<vmem>>, %arg4: memref<48x1xi32, #tpu.memory_space<vmem>>, %arg5: memref<48x1xf32, #tpu.memory_space<vmem>>, %arg6: memref<48x1xf32, #tpu.memory_space<vmem>>, %arg7: memref<48x128xf32, #tpu.memory_space<vmem>>, %arg8: memref<48x128xf32, #tpu.memory_space<vmem>>, %arg9: memref<48x128xf32, #tpu.memory_space<vmem>>) attributes {dimension_semantics = [#tpu.dimension_semantics<parallel>, #tpu.dimension_semantics<arbitrary>], iteration_bounds = array<i64: 1, 2>, scalar_prefetch = 0 : i64, scratch_operands = 3 : i64, tpu.core_type = #tpu.core_type<tc>, window_params = [{transform_indices = @transform_0, window_bounds = array<i64: 48, 128>}, {transform_indices = @transform_1, window_bounds = array<i64: 128, 256>}, {transform_indices = @transform_2, window_bounds = array<i64: 48, 1>}, {transform_indices = @transform_3, window_bounds = array<i64: 48, 1>}, {transform_indices = @transform_4, window_bounds = array<i64: 48, 1>}]} {
    %c0_i32 = arith.constant 0 : i32
    %0 = arith.cmpi eq, %arg1, %c0_i32 : i32
    %1 = arith.extui %0 : i1 to i32
    %c0_i32_0 = arith.constant 0 : i32
    %2 = arith.cmpi ne, %1, %c0_i32_0 : i32
    scf.if %2 {
      %cst_22 = arith.constant -1.000000e+30 : f32
      %49 = vector.broadcast %cst_22 : f32 to vector<48x128xf32>
      %c0_23 = arith.constant 0 : index
      %c0_24 = arith.constant 0 : index
      %50 = vector.load %arg7[%c0_23, %c0_24] : memref<48x128xf32, #tpu.memory_space<vmem>>, vector<48x128xf32>
      tpu.vector_store %arg7[%c0_23, %c0_24], %49 {strides = array<i32>} : memref<48x128xf32, #tpu.memory_space<vmem>>, vector<48x128xf32>,
      %cst_25 = arith.constant 0.000000e+00 : f32
      %51 = vector.broadcast %cst_25 : f32 to vector<48x128xf32>
      %c0_26 = arith.constant 0 : index
      %c0_27 = arith.constant 0 : index
      %52 = vector.load %arg8[%c0_26, %c0_27] : memref<48x128xf32, #tpu.memory_space<vmem>>, vector<48x128xf32>
      tpu.vector_store %arg8[%c0_26, %c0_27], %51 {strides = array<i32>} : memref<48x128xf32, #tpu.memory_space<vmem>>, vector<48x128xf32>,
      %cst_28 = arith.constant 0.000000e+00 : f32
      %53 = vector.broadcast %cst_28 : f32 to vector<48x128xf32>
      %c0_29 = arith.constant 0 : index
      %c0_30 = arith.constant 0 : index
      %54 = vector.load %arg9[%c0_29, %c0_30] : memref<48x128xf32, #tpu.memory_space<vmem>>, vector<48x128xf32>
      tpu.vector_store %arg9[%c0_29, %c0_30], %53 {strides = array<i32>} : memref<48x128xf32, #tpu.memory_space<vmem>>, vector<48x128xf32>,
    } else {
    }
    %c0 = arith.constant 0 : index
    %c0_1 = arith.constant 0 : index
    %3 = vector.load %arg2[%c0, %c0_1] : memref<48x128xbf16, #tpu.memory_space<vmem>>, vector<48x128xbf16>
    %c0_2 = arith.constant 0 : index
    %c0_3 = arith.constant 0 : index
    %4 = vector.load %arg3[%c0_2, %c0_3] : memref<128x256xbf16, #tpu.memory_space<vmem>>, vector<128x256xbf16>
    %cst = arith.constant dense<0.000000e+00> : vector<48x256xf32>
    %5 = tpu.matmul %3, %4, %cst {dimension_numbers = #tpu.dot_dimension_numbers<[1], [0], [0], [1], [0, 0, 1, 1], [], []>} : vector<48x128xbf16>, vector<128x256xbf16>, vector<48x256xf32> -> vector<48x256xf32>
    %6 = tpu.iota {dimensions = array<i32: 1>} : vector<48x256xi32>
    %c256_i32 = arith.constant 256 : i32
    %7 = arith.muli %arg1, %c256_i32 : i32
    %8 = vector.broadcast %7 : i32 to vector<48x256xi32>
    %9 = arith.addi %6, %8 : vector<48x256xi32>
    %c0_4 = arith.constant 0 : index
    %c0_5 = arith.constant 0 : index
    %10 = vector.load %arg4[%c0_4, %c0_5] : memref<48x1xi32, #tpu.memory_space<vmem>>, vector<48x1xi32>
    %11 = vector.broadcast %10 : vector<48x1xi32> to vector<48x256xi32>
    %12 = arith.cmpi eq, %9, %11 : vector<48x256xi32>
    %cst_6 = arith.constant dense<true> : vector<48x256xi1>
    %13 = arith.xori %12, %cst_6 : vector<48x256xi1>
    %c300_i32 = arith.constant 300 : i32
    %14 = vector.broadcast %c300_i32 : i32 to vector<48x256xi32>
    %15 = arith.cmpi slt, %9, %14 : vector<48x256xi32>
    %16 = arith.andi %13, %15 : vector<48x256xi1>
    %cst_7 = arith.constant -2.000000e+30 : f32
    %17 = vector.broadcast %cst_7 : f32 to vector<48x256xf32>
    %18 = arith.select %16, %5, %17 : vector<48x256xi1>, vector<48x256xf32>
    %cst_8 = arith.constant 0.000000e+00 : f32
    %19 = vector.broadcast %cst_8 : f32 to vector<48x256xf32>
    %20 = arith.select %12, %5, %19 : vector<48x256xi1>, vector<48x256xf32>
    %21 = vector.extract_strided_slice %18 {offsets = [0, 0], sizes = [48, 128], strides = [1, 1]} : vector<48x256xf32> to vector<48x128xf32>
    %22 = vector.extract_strided_slice %18 {offsets = [0, 128], sizes = [48, 128], strides = [1, 1]} : vector<48x256xf32> to vector<48x128xf32>
    %23 = arith.maximumf %21, %22 : vector<48x128xf32>
    %c0_9 = arith.constant 0 : index
    %c0_10 = arith.constant 0 : index
    %24 = vector.load %arg7[%c0_9, %c0_10] : memref<48x128xf32, #tpu.memory_space<vmem>>, vector<48x128xf32>
    %25 = arith.maximumf %24, %23 : vector<48x128xf32>
    %c0_11 = arith.constant 0 : index
    %c0_12 = arith.constant 0 : index
    %26 = vector.load %arg8[%c0_11, %c0_12] : memref<48x128xf32, #tpu.memory_space<vmem>>, vector<48x128xf32>
    %27 = arith.subf %24, %25 : vector<48x128xf32>
    %28 = math.exp %27 : vector<48x128xf32>
    %29 = arith.mulf %26, %28 : vector<48x128xf32>
    %30 = vector.extract_strided_slice %18 {offsets = [0, 0], sizes = [48, 128], strides = [1, 1]} : vector<48x256xf32> to vector<48x128xf32>
    %31 = arith.subf %30, %25 : vector<48x128xf32>
    %32 = math.exp %31 : vector<48x128xf32>
    %33 = arith.addf %29, %32 : vector<48x128xf32>
    %34 = vector.extract_strided_slice %18 {offsets = [0, 128], sizes = [48, 128], strides = [1, 1]} : vector<48x256xf32> to vector<48x128xf32>
    %35 = arith.subf %34, %25 : vector<48x128xf32>
    %36 = math.exp %35 : vector<48x128xf32>
    %37 = arith.addf %33, %36 : vector<48x128xf32>
    %c0_13 = arith.constant 0 : index
    %c0_14 = arith.constant 0 : index
    %38 = vector.load %arg8[%c0_13, %c0_14] : memref<48x128xf32, #tpu.memory_space<vmem>>, vector<48x128xf32>
    tpu.vector_store %arg8[%c0_13, %c0_14], %37 {strides = array<i32>} : memref<48x128xf32, #tpu.memory_space<vmem>>, vector<48x128xf32>,
    %c0_15 = arith.constant 0 : index
    %c0_16 = arith.constant 0 : index
    %39 = vector.load %arg7[%c0_15, %c0_16] : memref<48x128xf32, #tpu.memory_space<vmem>>, vector<48x128xf32>
    tpu.vector_store %arg7[%c0_15, %c0_16], %25 {strides = array<i32>} : memref<48x128xf32, #tpu.memory_space<vmem>>, vector<48x128xf32>,
    %c0_17 = arith.constant 0 : index
    %c0_18 = arith.constant 0 : index
    %40 = vector.load %arg9[%c0_17, %c0_18] : memref<48x128xf32, #tpu.memory_space<vmem>>, vector<48x128xf32>
    %41 = vector.extract_strided_slice %20 {offsets = [0, 0], sizes = [48, 128], strides = [1, 1]} : vector<48x256xf32> to vector<48x128xf32>
    %42 = arith.addf %40, %41 : vector<48x128xf32>
    %43 = vector.extract_strided_slice %20 {offsets = [0, 128], sizes = [48, 128], strides = [1, 1]} : vector<48x256xf32> to vector<48x128xf32>
    %44 = arith.addf %42, %43 : vector<48x128xf32>
    %c0_19 = arith.constant 0 : index
    %c0_20 = arith.constant 0 : index
    %45 = vector.load %arg9[%c0_19, %c0_20] : memref<48x128xf32, #tpu.memory_space<vmem>>, vector<48x128xf32>
    tpu.vector_store %arg9[%c0_19, %c0_20], %44 {strides = array<i32>} : memref<48x128xf32, #tpu.memory_space<vmem>>, vector<48x128xf32>,
    %c1_i32 = arith.constant 1 : i32
    %46 = arith.cmpi eq, %arg1, %c1_i32 : i32
    %47 = arith.extui %46 : i1 to i32
    %c0_i32_21 = arith.constant 0 : i32
    %48 = arith.cmpi ne, %47, %c0_i32_21 : i32
    scf.if %48 {
      %c0_22 = arith.constant 0 : index
      %c0_23 = arith.constant 0 : index
      %49 = vector.load %arg7[%c0_22, %c0_23] : memref<48x128xf32, #tpu.memory_space<vmem>>, vector<48x128xf32>
      %cst_24 = arith.constant dense<0xFF800000> : vector<48xf32>
      %50 = vector.multi_reduction <maximumf>, %49, %cst_24 [1] : vector<48x128xf32> to vector<48xf32>
      %51 = vector.shape_cast %50 : vector<48xf32> to vector<48x1xf32>
      %c0_25 = arith.constant 0 : index
      %c0_26 = arith.constant 0 : index
      %52 = vector.load %arg8[%c0_25, %c0_26] : memref<48x128xf32, #tpu.memory_space<vmem>>, vector<48x128xf32>
      %53 = vector.broadcast %51 : vector<48x1xf32> to vector<48x128xf32>
      %54 = arith.subf %49, %53 : vector<48x128xf32>
      %55 = math.exp %54 : vector<48x128xf32>
      %56 = arith.mulf %52, %55 : vector<48x128xf32>
      %cst_27 = arith.constant dense<0.000000e+00> : vector<48xf32>
      %57 = vector.multi_reduction <add>, %56, %cst_27 [1] : vector<48x128xf32> to vector<48xf32>
      %58 = vector.shape_cast %57 : vector<48xf32> to vector<48x1xf32>
      %59 = math.log %58 : vector<48x1xf32>
      %60 = arith.addf %51, %59 : vector<48x1xf32>
      %c0_28 = arith.constant 0 : index
      %c0_29 = arith.constant 0 : index
      %61 = vector.load %arg5[%c0_28, %c0_29] : memref<48x1xf32, #tpu.memory_space<vmem>>, vector<48x1xf32>
      tpu.vector_store %arg5[%c0_28, %c0_29], %60 {strides = array<i32>} : memref<48x1xf32, #tpu.memory_space<vmem>>, vector<48x1xf32>,
      %c0_30 = arith.constant 0 : index
      %c0_31 = arith.constant 0 : index
      %62 = vector.load %arg9[%c0_30, %c0_31] : memref<48x128xf32, #tpu.memory_space<vmem>>, vector<48x128xf32>
      %cst_32 = arith.constant dense<0.000000e+00> : vector<48xf32>
      %63 = vector.multi_reduction <add>, %62, %cst_32 [1] : vector<48x128xf32> to vector<48xf32>
      %64 = vector.shape_cast %63 : vector<48xf32> to vector<48x1xf32>
      %c0_33 = arith.constant 0 : index
      %c0_34 = arith.constant 0 : index
      %65 = vector.load %arg6[%c0_33, %c0_34] : memref<48x1xf32, #tpu.memory_space<vmem>>, vector<48x1xf32>
      tpu.vector_store %arg6[%c0_33, %c0_34], %64 {strides = array<i32>} : memref<48x1xf32, #tpu.memory_space<vmem>>, vector<48x1xf32>,
    } else {
    }
    return
  }
  func.func @transform_0(%arg0: i32, %arg1: i32) -> (i32, i32) {
    %c0_i32 = arith.constant 0 : i32
    %c0_i32_0 = arith.constant 0 : i32
    return %arg0, %c0_i32 : i32, i32
  }
  func.func @transform_1(%arg0: i32, %arg1: i32) -> (i32, i32) {
    %c0_i32 = arith.constant 0 : i32
    %c0_i32_0 = arith.constant 0 : i32
    return %c0_i32, %arg1 : i32, i32
  }
  func.func @transform_2(%arg0: i32, %arg1: i32) -> (i32, i32) {
    %c0_i32 = arith.constant 0 : i32
    %c0_i32_0 = arith.constant 0 : i32
    return %arg0, %c0_i32 : i32, i32
  }
  func.func @transform_3(%arg0: i32, %arg1: i32) -> (i32, i32) {
    %c0_i32 = arith.constant 0 : i32
    %c0_i32_0 = arith.constant 0 : i32
    return %arg0, %c0_i32 : i32, i32
  }
  func.func @transform_4(%arg0: i32, %arg1: i32) -> (i32, i32) {
    %c0_i32 = arith.constant 0 : i32
    %c0_i32_0 = arith.constant 0 : i32
    return %arg0, %c0_i32 : i32, i32
  }
}

</mosaic_0001>

<llo_original>
// kernel: tpu_custom_call.1
$region0: #{tpu_custom_call.1}
  #allocation0 [shape = 'u32[]', space=smem, size = 0x4, offset = 0x4, fixed_abs, tag = 'smem constant byte address 0x4 - core index']
  #allocation1 [shape = 'u32[144,128]{1,0:T(1,128)}', space=vmem, size = 0x12000, scoped, tag = 'internal scratch']
  #allocation2 [shape = 'f32[48,128]{1,0:T(8,128)}', space=vmem, size = 0x6000, scoped, tag = 'scratch operand']
  #allocation3 [shape = 'f32[48,128]{1,0:T(8,128)}', space=vmem, size = 0x6000, scoped, tag = 'scratch operand']
  #allocation4 [shape = 'f32[48,128]{1,0:T(8,128)}', space=vmem, size = 0x6000, scoped, tag = 'scratch operand']
  %s0 = inlined_call_operand.vmem [shape: bf16[48,128], index: 0, kind: input, shape index: {}]
  %s1 = inlined_call_operand.hbm [shape: bf16[128,512], index: 1, kind: input, shape index: {}]
  %s2 = inlined_call_operand.vmem [shape: s32[48,1], index: 2, kind: input, shape index: {}]
  %s3 = inlined_call_operand.vmem [shape: f32[48,1], index: 3, kind: output, shape index: {0}]
  %s4 = inlined_call_operand.vmem [shape: f32[48,1], index: 4, kind: output, shape index: {1}]
  %5 = xla_tuple %s3, %s4
  %s6 = sld [smem:[#allocation0]]
  $region65: #{tpu_custom_call.1} parent=0
    _
  %s8 = ssub.s32 1, %s6
  %s9 = scalar_select 0, %s8, %s6
  $region1: #{tpu_custom_call.1} parent=0
    #allocation5 [shape = 'u8[131072]{0}', space=vmem, size = 0x20000, scoped, tag = 'input window, operand 1']
    #allocation6 [shape = 's32[2]{0}', space=sflag, size = 0x8, scoped, tag = 'scoped memory for tpu_custom_call.1']
    %10 = vsyncpa [#allocation6], 0
    %s11 = scalar_lea.sflag [#allocation6], 1
    %12 = vsyncpa %s11, 0
    loop: start=0, step=1, limit=4
    $region2: #{tpu_custom_call.1} parent=1 // loop_pre_header
      _
    $region3: #{tpu_custom_call.1} parent=1 // loop_header
      %s14 = sphi 0, %s18
      %p15 = scmp.ge.s32.totalorder %s14, 4
      %s21 = sphi 0, %s33
      %s22 = sphi 0, %s29
      %s23 = sphi 0, %s21
      %s24 = sphi 0, %s22
      %s25 = sphi 0, %s23
      %s26 = sphi 0, %s24
      %s36 = sphi 0, %s38
      %s39 = sphi 0, %s36
      %s40 = sphi 0, %s39
      %s56 = sphi 0, %s40
      %s62 = sphi 0, %s64
      %s65 = sphi 0, %s62
      %s66 = sphi 0, %s65
      %s82 = sphi 0, %s66
      %s88 = sphi 0, %s90
      %s91 = sphi 0, %s88
      %s92 = sphi 0, %s91
      %s108 = sphi 0, %s92
      %s114 = sphi 0, %s116
      %s117 = sphi 0, %s114
      %s118 = sphi 0, %s117
      %s134 = sphi 0, %s118
      %s140 = sphi 0, %s142
      %s143 = sphi 0, %s140
      %s144 = sphi 0, %s143
      %s160 = sphi 0, %s144
    $region4: #{tpu_custom_call.1} parent=1 // loop_header_branch
      %17 = sbr.rel (%p15) target = $region8
    $region5: #{tpu_custom_call.1} parent=1 // loop_body
      %s19 = ssub.s32 %s14, 1
      %s20 = ssub.s32 %s14, 2
      %s27 = sadd.s32 1, %s22
      %p28 = scmp.ge.s32.totalorder %s27, 2
      %s29 = scalar_select %p28, 0, %s27
      %s30 = sadd.s32 1, %s21
      %s31 = scalar_select %p28, %s30, %s21
      %p32 = scmp.ge.s32.totalorder %s31, 1
      %s33 = scalar_select %p32, 0, %s31
      %s34 = ssub.s32 %s21, %s33
      %p35 = scmp.eq.s32.totalorder %s34, 0
      %s37 = sadd.s32 %s36, 1
      %s38 = scalar_select %p35, %s36, %s37
      %p41 = pneg %p35
      %p42 = scmp.eq.s32.totalorder %s14, 1
      %p43 = por %p41, %p42
      %p44 = scmp.ne.s32.totalorder %s36, %s39
      %p45 = scmp.eq.s32.totalorder %s14, 0
      %p46 = por %p44, %p45
      %p47 = scmp.ne.s32.totalorder %s36, %s39
      %p48 = scmp.eq.s32.totalorder %s19, 1
      %p49 = por %p47, %p48
      %p50 = scmp.ne.s32.totalorder %s39, %s40
      %p51 = scmp.eq.s32.totalorder %s19, 0
      %p52 = por %p50, %p51
      %p53 = scmp.ne.s32.totalorder %s39, %s40
      %p54 = scmp.eq.s32.totalorder %s20, 1
      %p55 = por %p53, %p54
      %p57 = scmp.ne.s32.totalorder %s40, %s56
      %p58 = scmp.eq.s32.totalorder %s20, 0
      %p59 = por %p57, %p58
      %s60 = ssub.s32 %s22, %s29
      %p61 = scmp.eq.s32.totalorder %s60, 0
      %s63 = sadd.s32 %s62, 1
      %s64 = scalar_select %p61, %s62, %s63
      %p67 = pneg %p61
      %p68 = scmp.eq.s32.totalorder %s14, 1
      %p69 = por %p67, %p68
      %p70 = scmp.ne.s32.totalorder %s62, %s65
      %p71 = scmp.eq.s32.totalorder %s14, 0
      %p72 = por %p70, %p71
      %p73 = scmp.ne.s32.totalorder %s62, %s65
      %p74 = scmp.eq.s32.totalorder %s19, 1
      %p75 = por %p73, %p74
      %p76 = scmp.ne.s32.totalorder %s65, %s66
      %p77 = scmp.eq.s32.totalorder %s19, 0
      %p78 = por %p76, %p77
      %p79 = scmp.ne.s32.totalorder %s65, %s66
      %p80 = scmp.eq.s32.totalorder %s20, 1
      %p81 = por %p79, %p80
      %p83 = scmp.ne.s32.totalorder %s66, %s82
      %p84 = scmp.eq.s32.totalorder %s20, 0
      %p85 = por %p83, %p84
      %s86 = ssub.s32 %s21, %s33
      %p87 = scmp.eq.s32.totalorder %s86, 0
      %s89 = sadd.s32 %s88, 1
      %s90 = scalar_select %p87, %s88, %s89
      %p93 = pneg %p87
      %p94 = scmp.eq.s32.totalorder %s14, 1
      %p95 = por %p93, %p94
      %p96 = scmp.ne.s32.totalorder %s88, %s91
      %p97 = scmp.eq.s32.totalorder %s14, 0
      %p98 = por %p96, %p97
      %p99 = scmp.ne.s32.totalorder %s88, %s91
      %p100 = scmp.eq.s32.totalorder %s19, 1
      %p101 = por %p99, %p100
      %p102 = scmp.ne.s32.totalorder %s91, %s92
      %p103 = scmp.eq.s32.totalorder %s19, 0
      %p104 = por %p102, %p103
      %p105 = scmp.ne.s32.totalorder %s91, %s92
      %p106 = scmp.eq.s32.totalorder %s20, 1
      %p107 = por %p105, %p106
      %p109 = scmp.ne.s32.totalorder %s92, %s108
      %p110 = scmp.eq.s32.totalorder %s20, 0
      %p111 = por %p109, %p110
      %s112 = ssub.s32 %s21, %s33
      %p113 = scmp.eq.s32.totalorder %s112, 0
      %s115 = sadd.s32 %s114, 1
      %s116 = scalar_select %p113, %s114, %s115
      %p119 = pneg %p113
      %p120 = scmp.eq.s32.totalorder %s14, 1
      %p121 = por %p119, %p120
      %p122 = scmp.ne.s32.totalorder %s114, %s117
      %p123 = scmp.eq.s32.totalorder %s14, 0
      %p124 = por %p122, %p123
      %p125 = scmp.ne.s32.totalorder %s114, %s117
      %p126 = scmp.eq.s32.totalorder %s19, 1
      %p127 = por %p125, %p126
      %p128 = scmp.ne.s32.totalorder %s117, %s118
      %p129 = scmp.eq.s32.totalorder %s19, 0
      %p130 = por %p128, %p129
      %p131 = scmp.ne.s32.totalorder %s117, %s118
      %p132 = scmp.eq.s32.totalorder %s20, 1
      %p133 = por %p131, %p132
      %p135 = scmp.ne.s32.totalorder %s118, %s134
      %p136 = scmp.eq.s32.totalorder %s20, 0
      %p137 = por %p135, %p136
      %s138 = ssub.s32 %s21, %s33
      %p139 = scmp.eq.s32.totalorder %s138, 0
      %s141 = sadd.s32 %s140, 1
      %s142 = scalar_select %p139, %s140, %s141
      %p145 = pneg %p139
      %p146 = scmp.eq.s32.totalorder %s14, 1
      %p147 = por %p145, %p146
      %p148 = scmp.ne.s32.totalorder %s140, %s143
      %p149 = scmp.eq.s32.totalorder %s14, 0
      %p150 = por %p148, %p149
      %p151 = scmp.ne.s32.totalorder %s140, %s143
      %p152 = scmp.eq.s32.totalorder %s19, 1
      %p153 = por %p151, %p152
      %p154 = scmp.ne.s32.totalorder %s143, %s144
      %p155 = scmp.eq.s32.totalorder %s19, 0
      %p156 = por %p154, %p155
      %p157 = scmp.ne.s32.totalorder %s143, %s144
      %p158 = scmp.eq.s32.totalorder %s20, 1
      %p159 = por %p157, %p158
      %p161 = scmp.ne.s32.totalorder %s144, %s160
      %p162 = scmp.eq.s32.totalorder %s20, 0
      %p163 = por %p161, %p162
      %p164 = scmp.le.s32.totalorder 1, %s14
      %p165 = scmp.lt.s32.totalorder %s14, 3
      %p166 = pnand %p164, %p165
      %p167 = pneg %p166
      // Predicated region
      $region9: #{tpu_custom_call.1} parent=5 // pred_check
        _
      $region10: #{tpu_custom_call.1} parent=5 // pred_check_branch
        %169 = sbr.rel (%p166) target = $region12
      $region11: #{tpu_custom_call.1} parent=5 // pred_region
        %s170 = ssub.s32 %s14, 1
        // Predicated region
        $region13: #{tpu_custom_call.1} parent=11 // pred_check
          %p171 = pneg %p52
        $region14: #{tpu_custom_call.1} parent=11 // pred_check_branch
          %173 = sbr.rel (%p171) target = $region16
        $region15: #{tpu_custom_call.1} parent=11 // pred_region
          %s174 = smul.u32 6, %s23
          %p175 = scmp.lt.s32.totalorder %s174, 5
          %s176 = scalar_select %p175, %s174, 5
          %s177 = smul.addr %s176, 4
          %s178 = scalar_lea.vmem %s0, %s177
          %s179 = smul.u32 6, %s23
        $region16: #{tpu_custom_call.1} parent=11 // pred_fallthru
          _
        // Predicated region
        $region17: #{tpu_custom_call.1} parent=11 // pred_check
          %p180 = pneg %p104
        $region18: #{tpu_custom_call.1} parent=11 // pred_check_branch
          %182 = sbr.rel (%p180) target = $region20
        $region19: #{tpu_custom_call.1} parent=11 // pred_region
          %s183 = smul.u32 6, %s23
          %p184 = scmp.lt.s32.totalorder %s183, 5
          %s185 = scalar_select %p184, %s183, 5
          %s186 = smul.addr %s185, 8
          %s187 = scalar_lea.vmem %s2, %s186
          %s188 = smul.u32 6, %s23
        $region20: #{tpu_custom_call.1} parent=11 // pred_fallthru
          _
      $region12: #{tpu_custom_call.1} parent=5 // pred_fallthru
        _
      %p189 = scmp.lt.s32.totalorder %s14, 2
      // Predicated region
      $region21: #{tpu_custom_call.1} parent=5 // pred_check
        %p190 = pneg %p189
      $region22: #{tpu_custom_call.1} parent=5 // pred_check_branch
        %192 = sbr.rel (%p190) target = $region24
      $region23: #{tpu_custom_call.1} parent=5 // pred_region
        // Predicated region
        $region25: #{tpu_custom_call.1} parent=23 // pred_check
          %p193 = pneg %p72
        $region26: #{tpu_custom_call.1} parent=23 // pred_check_branch
          %195 = sbr.rel (%p193) target = $region28
        $region27: #{tpu_custom_call.1} parent=23 // pred_region
          %s196 = sand.u32 %s62, 1
          %s197 = scalar_lea.sflag [#allocation6], %s196
          %s198 = sand.u32 %s62, 1
          %s199 = smul.addr %s198, 128
          %s200 = scalar_lea.vmem [#allocation5], %s199
          %s201 = smul.u32 2, %s22
          %s203 = ssub.s32 2048, 2048
          %204 = vsyncadd %s197, %s203
          %s205 = smul.addr %s201, 64
          %s206 = scalar_lea.hbm %s1, %s205
          %s207 = sshll.u32 %s200, 4
          %s208 = int_to_ptr.vmem [resolvable:$true] %s207
          %213 = dma.hbm_to_vmem [thread:$0]  %s206, 2048, %s208, %s197, 256, 128, 8
        $region28: #{tpu_custom_call.1} parent=23 // pred_fallthru
          _
      $region24: #{tpu_custom_call.1} parent=5 // pred_fallthru
        _
      %p214 = scmp.le.s32.totalorder 1, %s14
      %p215 = scmp.lt.s32.totalorder %s14, 3
      %p216 = pnand %p214, %p215
      %p217 = pneg %p216
      // Predicated region
      $region29: #{tpu_custom_call.1} parent=5 // pred_check
        _
      $region30: #{tpu_custom_call.1} parent=5 // pred_check_branch
        %219 = sbr.rel (%p216) target = $region32
      $region31: #{tpu_custom_call.1} parent=5 // pred_region
        %s220 = ssub.s32 %s14, 1
        %s221 = sand.u32 %s65, 1
        %s222 = scalar_lea.sflag [#allocation6], %s221
        %s223 = sand.u32 %s65, 1
        %s224 = smul.addr %s223, 128
        %s225 = scalar_lea.vmem [#allocation5], %s224
        // Predicated region
        $region33: #{tpu_custom_call.1} parent=31 // pred_check
          %p226 = pneg %p78
        $region34: #{tpu_custom_call.1} parent=31 // pred_check_branch
          %228 = sbr.rel (%p226) target = $region36
        $region35: #{tpu_custom_call.1} parent=31 // pred_region
          %229 = dma.done %s222, 2048
        $region36: #{tpu_custom_call.1} parent=31 // pred_fallthru
          _
        %s230 = smul.u32 6, %s23
        %p231 = scmp.lt.s32.totalorder %s230, 5
        %s232 = scalar_select %p231, %s230, 5
        %s233 = smul.addr %s232, 4
        %s234 = scalar_lea.vmem %s0, %s233
        %p235 = pneg %p52
        %p236 = pneg %p49
        %s237 = sand.u32 %s65, 1
        %s238 = scalar_lea.sflag [#allocation6], %s237
        %s239 = sand.u32 %s65, 1
        %s240 = smul.addr %s239, 128
        %s241 = scalar_lea.vmem [#allocation5], %s240
        %p242 = pneg %p78
        %p243 = pneg %p75
        %s244 = smul.u32 6, %s23
        %p245 = scmp.lt.s32.totalorder %s244, 5
        %s246 = scalar_select %p245, %s244, 5
        %s247 = smul.addr %s246, 8
        %s248 = scalar_lea.vmem %s2, %s247
        %p249 = pneg %p104
        %p250 = pneg %p101
        %p251 = pneg %p130
        %p252 = pneg %p127
        %s253 = smul.u32 6, %s23
        %p254 = scmp.lt.s32.totalorder %s253, 5
        %s255 = scalar_select %p254, %s253, 5
        %s256 = smul.addr %s255, 8
        %s257 = scalar_lea.vmem %s3, %s256
        %p258 = pneg %p156
        %p259 = pneg %p153
        %s260 = smul.u32 6, %s23
        %p261 = scmp.lt.s32.totalorder %s260, 5
        %s262 = scalar_select %p261, %s260, 5
        %s263 = smul.addr %s262, 8
        %s264 = scalar_lea.vmem %s4, %s263
        %s265 = smul.u32 6, %s23
        %p266 = scmp.lt.s32.totalorder %s265, 5
        %s267 = scalar_select %p266, %s265, 5
        %s268 = smul.addr %s267, 4
        %s269 = scalar_lea.vmem %s0, %s268
        %s270 = smul.u32 6, %s23
        %s271 = smul.u32 2, %s24
        %s272 = smul.u32 6, %s23
        %p273 = scmp.lt.s32.totalorder %s272, 5
        %s274 = scalar_select %p273, %s272, 5
        %s275 = smul.addr %s274, 8
        %s276 = scalar_lea.vmem %s2, %s275
        %s277 = smul.u32 6, %s23
        %s278 = smul.u32 6, %s23
        %p279 = scmp.lt.s32.totalorder %s278, 5
        %s280 = scalar_select %p279, %s278, 5
        %s281 = smul.addr %s280, 8
        %s282 = scalar_lea.vmem %s3, %s281
        %s283 = smul.u32 6, %s23
        %s284 = smul.u32 6, %s23
        %p285 = scmp.lt.s32.totalorder %s284, 5
        %s286 = scalar_select %p285, %s284, 5
        %s287 = smul.addr %s286, 8
        %s288 = scalar_lea.vmem %s4, %s287
        %s289 = smul.u32 6, %s23
        %p291 = scmp.eq.s32.totalorder %s24, 0
        // Predicated region
        $region37: #{tpu_custom_call.1} parent=31 // pred_check
          %p292 = pneg %p291
        $region38: #{tpu_custom_call.1} parent=31 // pred_check_branch
          %294 = sbr.rel (%p292) target = $region40
        $region39: #{tpu_custom_call.1} parent=31 // pred_region
          %295 = vst [vmem:[#allocation2] sm:$0xff] -1e+30
          %296 = vst [vmem:[#allocation2 + $0x8] sm:$0xff] -1e+30
          %297 = vst [vmem:[#allocation2 + $0x10] sm:$0xff] -1e+30
          %298 = vst [vmem:[#allocation2 + $0x18] sm:$0xff] -1e+30
          %299 = vst [vmem:[#allocation2 + $0x20] sm:$0xff] -1e+30
          %300 = vst [vmem:[#allocation2 + $0x28] sm:$0xff] -1e+30
          %301 = vst [vmem:[#allocation3] sm:$0xff] 0.0
          %302 = vst [vmem:[#allocation3 + $0x8] sm:$0xff] 0.0
          %303 = vst [vmem:[#allocation3 + $0x10] sm:$0xff] 0.0
          %304 = vst [vmem:[#allocation3 + $0x18] sm:$0xff] 0.0
          %305 = vst [vmem:[#allocation3 + $0x20] sm:$0xff] 0.0
          %306 = vst [vmem:[#allocation3 + $0x28] sm:$0xff] 0.0
          %307 = vst [vmem:[#allocation4] sm:$0xff] 0.0
          %308 = vst [vmem:[#allocation4 + $0x8] sm:$0xff] 0.0
          %309 = vst [vmem:[#allocation4 + $0x10] sm:$0xff] 0.0
          %310 = vst [vmem:[#allocation4 + $0x18] sm:$0xff] 0.0
          %311 = vst [vmem:[#allocation4 + $0x20] sm:$0xff] 0.0
          %312 = vst [vmem:[#allocation4 + $0x28] sm:$0xff] 0.0
        $region40: #{tpu_custom_call.1} parent=31 // pred_fallthru
          _
        %v313 = vld [vmem:[%s269] sm:$0xf]
        %v314 = vld [vmem:[%s269 + $0x4] sm:$0xf]
        %v315 = vld [vmem:[%s269 + $0x8] sm:$0xf]
        %v316 = vld [vmem:[%s269 + $0xc] sm:$0xf]
        %v317 = vld [vmem:[%s269 + $0x10] sm:$0xf]
        %v318 = vld [vmem:[%s269 + $0x14] sm:$0xf]
        %v319 = vld [vmem:[%s225] sm:$0xff]
        %v320 = vld [vmem:[%s225 + $0x8] sm:$0xff]
        %v321 = vld [vmem:[%s225 + $0x10] sm:$0xff]
        %v322 = vld [vmem:[%s225 + $0x18] sm:$0xff]
        %v323 = vld [vmem:[%s225 + $0x20] sm:$0xff]
        %v324 = vld [vmem:[%s225 + $0x28] sm:$0xff]
        %v325 = vld [vmem:[%s225 + $0x30] sm:$0xff]
        %v326 = vld [vmem:[%s225 + $0x38] sm:$0xff]
        %v327 = vld [vmem:[%s225 + $0x40] sm:$0xff]
        %v328 = vld [vmem:[%s225 + $0x48] sm:$0xff]
        %v329 = vld [vmem:[%s225 + $0x50] sm:$0xff]
        %v330 = vld [vmem:[%s225 + $0x58] sm:$0xff]
        %v331 = vld [vmem:[%s225 + $0x60] sm:$0xff]
        %v332 = vld [vmem:[%s225 + $0x68] sm:$0xff]
        %v333 = vld [vmem:[%s225 + $0x70] sm:$0xff]
        %v334 = vld [vmem:[%s225 + $0x78] sm:$0xff]
        %v341 = vunpack.c.l.b16 %v313
        %v342 = vunpack.c.l.b16 %v314
        %v343 = vunpack.c.l.b16 %v315
        %v344 = vunpack.c.l.b16 %v316
        %v345 = vunpack.c.l.b16 %v317
        %v346 = vunpack.c.l.b16 %v318
        %v347 = vpack.c.b16 %v342, %v341
        %v348 = vpack.c.b16 %v344, %v343
        %v349 = vpack.c.b16 %v346, %v345
        %v369 = vunpack.c.l.b16 %v319
        %v370 = vunpack.c.h.b16 %v319
        %v371 = vunpack.c.l.b16 %v320
        %v372 = vunpack.c.h.b16 %v320
        %v373 = vunpack.c.l.b16 %v321
        %v374 = vunpack.c.h.b16 %v321
        %v375 = vunpack.c.l.b16 %v322
        %v376 = vunpack.c.h.b16 %v322
        %v377 = vunpack.c.l.b16 %v323
        %v378 = vunpack.c.h.b16 %v323
        %v379 = vunpack.c.l.b16 %v324
        %v380 = vunpack.c.h.b16 %v324
        %v381 = vunpack.c.l.b16 %v325
        %v382 = vunpack.c.h.b16 %v325
        %v383 = vunpack.c.l.b16 %v326
        %v384 = vunpack.c.h.b16 %v326
        %v385 = vunpack.c.l.b16 %v327
        %v386 = vunpack.c.h.b16 %v327
        %v387 = vunpack.c.l.b16 %v328
        %v388 = vunpack.c.h.b16 %v328
        %v389 = vunpack.c.l.b16 %v329
        %v390 = vunpack.c.h.b16 %v329
        %v391 = vunpack.c.l.b16 %v330
        %v392 = vunpack.c.h.b16 %v330
        %v393 = vunpack.c.l.b16 %v331
        %v394 = vunpack.c.h.b16 %v331
        %v395 = vunpack.c.l.b16 %v332
        %v396 = vunpack.c.h.b16 %v332
        %v397 = vunpack.c.l.b16 %v333
        %v398 = vunpack.c.h.b16 %v333
        %v399 = vunpack.c.l.b16 %v334
        %v400 = vunpack.c.h.b16 %v334
        %v401 = vpack.c.b16 %v371, %v369
        %v402 = vpack.c.b16 %v372, %v370
        %v403 = vpack.c.b16 %v375, %v373
        %v404 = vpack.c.b16 %v376, %v374
        %v405 = vpack.c.b16 %v379, %v377
        %v406 = vpack.c.b16 %v380, %v378
        %v407 = vpack.c.b16 %v383, %v381
        %v408 = vpack.c.b16 %v384, %v382
        %v409 = vpack.c.b16 %v387, %v385
        %v410 = vpack.c.b16 %v388, %v386
        %v411 = vpack.c.b16 %v391, %v389
        %v412 = vpack.c.b16 %v392, %v390
        %v413 = vpack.c.b16 %v395, %v393
        %v414 = vpack.c.b16 %v396, %v394
        %v415 = vpack.c.b16 %v399, %v397
        %v416 = vpack.c.b16 %v400, %v398
        %433 = vmatprep.subr.bf16.mxu0 %v402
        %434 = vmatpush1.bf16.msra.mxu0 %v401
        %435 = vmatprep.subr.bf16.mxu0 %v404
        %436 = vmatpush1.bf16.msra.mxu0 %v403
        %437 = vmatprep.subr.bf16.mxu0 %v406
        %438 = vmatpush1.bf16.msra.mxu0 %v405
        %439 = vmatprep.subr.bf16.mxu0 %v408
        %440 = vmatpush1.bf16.msra.mxu0 %v407
        %441 = vmatprep.subr.bf16.mxu0 %v410
        %442 = vmatpush1.bf16.msra.mxu0 %v409
        %443 = vmatprep.subr.bf16.mxu0 %v412
        %444 = vmatpush1.bf16.msra.mxu0 %v411
        %445 = vmatprep.subr.bf16.mxu0 %v414
        %446 = vmatpush1.bf16.msra.mxu0 %v413
        %447 = vmatprep.subr.bf16.mxu0 %v416
        %448 = vmatpush1.bf16.msra.mxu0 %v415
        %449 = vmatprep.subr.bf16.mxu0 0
        %450 = vmatpush1.bf16.msra.mxu0 0
        %451 = vmatprep.subr.bf16.mxu0 0
        %452 = vmatpush1.bf16.msra.mxu0 0
        %453 = vmatprep.subr.bf16.mxu0 0
        %454 = vmatpush1.bf16.msra.mxu0 0
        %455 = vmatprep.subr.bf16.mxu0 0
        %456 = vmatpush1.bf16.msra.mxu0 0
        %457 = vmatprep.subr.bf16.mxu0 0
        %458 = vmatpush1.bf16.msra.mxu0 0
        %459 = vmatprep.subr.bf16.mxu0 0
        %460 = vmatpush1.bf16.msra.mxu0 0
        %461 = vmatprep.subr.bf16.mxu0 0
        %462 = vmatpush1.bf16.msra.mxu0 0
        %463 = vmatprep.subr.bf16.mxu0 0
        %464 = vmatpush1.bf16.msra.mxu0 0
        %465 = vmatprep.mubr.bf16.mxu0 0
        %466 = vmatmul.mubr.bf16.gmra.mrb[0].mxu0 %v347
        %v467 = vpop.f32.mrb[0].mxu0
        %v468 = vadd.f32 0.0, %v467
        %v469 = vpop.f32.mrb[0].mxu0
        %v470 = vadd.f32 0.0, %v469
        %v471 = vpop.f32.mrb[0].mxu0
        %v472 = vadd.f32 0.0, %v471
        %v473 = vpop.f32.mrb[0].mxu0
        %v474 = vadd.f32 0.0, %v473
        %475 = vmatprep.mubr.bf16.mxu0 0
        %476 = vmatmul.mubr.bf16.gmra.mrb[0].mxu0 %v348
        %v477 = vpop.f32.mrb[0].mxu0
        %v478 = vadd.f32 0.0, %v477
        %v479 = vpop.f32.mrb[0].mxu0
        %v480 = vadd.f32 0.0, %v479
        %v481 = vpop.f32.mrb[0].mxu0
        %v482 = vadd.f32 0.0, %v481
        %v483 = vpop.f32.mrb[0].mxu0
        %v484 = vadd.f32 0.0, %v483
        %485 = vmatprep.mubr.bf16.mxu0 0
        %486 = vmatmul.mubr.bf16.gmra.mrb[0].mxu0 %v349
        %v487 = vpop.f32.mrb[0].mxu0
        %v488 = vadd.f32 0.0, %v487
        %v489 = vpop.f32.mrb[0].mxu0
        %v490 = vadd.f32 0.0, %v489
        %v491 = vpop.f32.mrb[0].mxu0
        %v492 = vadd.f32 0.0, %v491
        %v493 = vpop.f32.mrb[0].mxu0
        %v494 = vadd.f32 0.0, %v493
        %495 = vdwg.mxu0
        %v496 = vlaneseq
        %v497 = vand.u32 %v496, 127
        %v498 = vadd.s32 %v497, 128
        %s499 = smul.u32 %s24, 256
        %v500 = vstv %s499
        %v501 = vadd.s32 %v497, %v500
        %v502 = vadd.s32 %v498, %v500
        %v503 = vld [vmem:[%s276] sm:$0xff]
        %v504 = vld [vmem:[%s276 + $0x8] sm:$0xff]
        %v505 = vld [vmem:[%s276 + $0x10] sm:$0xff]
        %v506 = vld [vmem:[%s276 + $0x18] sm:$0xff]
        %v507 = vld [vmem:[%s276 + $0x20] sm:$0xff]
        %v508 = vld [vmem:[%s276 + $0x28] sm:$0xff]
        %509 = vset.pattern.permute.xlu0 0
        %510 = vperm.xlu0 %509, %v503
        %v511 = vpop.permute.xlu0 %510
        %512 = vset.pattern.permute.xlu0 0
        %513 = vperm.xlu0 %512, %v504
        %v514 = vpop.permute.xlu0 %513
        %515 = vset.pattern.permute.xlu0 0
        %516 = vperm.xlu0 %515, %v505
        %v517 = vpop.permute.xlu0 %516
        %518 = vset.pattern.permute.xlu0 0
        %519 = vperm.xlu0 %518, %v506
        %v520 = vpop.permute.xlu0 %519
        %521 = vset.pattern.permute.xlu0 0
        %522 = vperm.xlu0 %521, %v507
        %v523 = vpop.permute.xlu0 %522
        %524 = vset.pattern.permute.xlu0 0
        %525 = vperm.xlu0 %524, %v508
        %v526 = vpop.permute.xlu0 %525
        %vm527 = vcmp.eq.s32.totalorder %v501, %v511
        %vm528 = vcmp.eq.s32.totalorder %v502, %v511
        %vm529 = vcmp.eq.s32.totalorder %v501, %v514
        %vm530 = vcmp.eq.s32.totalorder %v502, %v514
        %vm531 = vcmp.eq.s32.totalorder %v501, %v517
        %vm532 = vcmp.eq.s32.totalorder %v502, %v517
        %vm533 = vcmp.eq.s32.totalorder %v501, %v520
        %vm534 = vcmp.eq.s32.totalorder %v502, %v520
        %vm535 = vcmp.eq.s32.totalorder %v501, %v523
        %vm536 = vcmp.eq.s32.totalorder %v502, %v523
        %vm537 = vcmp.eq.s32.totalorder %v501, %v526
        %vm538 = vcmp.eq.s32.totalorder %v502, %v526
        %vm539 = vmxor %vm527, 1
        %vm540 = vmxor %vm528, 1
        %vm541 = vmxor %vm529, 1
        %vm542 = vmxor %vm530, 1
        %vm543 = vmxor %vm531, 1
        %vm544 = vmxor %vm532, 1
        %vm545 = vmxor %vm533, 1
        %vm546 = vmxor %vm534, 1
        %vm547 = vmxor %vm535, 1
        %vm548 = vmxor %vm536, 1
        %vm549 = vmxor %vm537, 1
        %vm550 = vmxor %vm538, 1
        %vm551 = vcmp.lt.s32.totalorder %v501, 300
        %vm552 = vcmp.lt.s32.totalorder %v502, 300
        %vm553 = vmand %vm539, %vm551
        %vm554 = vmand %vm540, %vm552
        %vm555 = vmand %vm541, %vm551
        %vm556 = vmand %vm542, %vm552
        %vm557 = vmand %vm543, %vm551
        %vm558 = vmand %vm544, %vm552
        %vm559 = vmand %vm545, %vm551
        %vm560 = vmand %vm546, %vm552
        %vm561 = vmand %vm547, %vm551
        %vm562 = vmand %vm548, %vm552
        %vm563 = vmand %vm549, %vm551
        %vm564 = vmand %vm550, %vm552
        %v565 = vsel %vm553, %v468, -2e+30
        %v566 = vsel %vm554, %v470, -2e+30
        %v567 = vsel %vm555, %v472, -2e+30
        %v568 = vsel %vm556, %v474, -2e+30
        %v569 = vsel %vm557, %v478, -2e+30
        %v570 = vsel %vm558, %v480, -2e+30
        %v571 = vsel %vm559, %v482, -2e+30
        %v572 = vsel %vm560, %v484, -2e+30
        %v573 = vsel %vm561, %v488, -2e+30
        %v574 = vsel %vm562, %v490, -2e+30
        %v575 = vsel %vm563, %v492, -2e+30
        %v576 = vsel %vm564, %v494, -2e+30
        %v577 = vsel %vm527, %v468, 0.0
        %v578 = vsel %vm528, %v470, 0.0
        %v579 = vsel %vm529, %v472, 0.0
        %v580 = vsel %vm530, %v474, 0.0
        %v581 = vsel %vm531, %v478, 0.0
        %v582 = vsel %vm532, %v480, 0.0
        %v583 = vsel %vm533, %v482, 0.0
        %v584 = vsel %vm534, %v484, 0.0
        %v585 = vsel %vm535, %v488, 0.0
        %v586 = vsel %vm536, %v490, 0.0
        %v587 = vsel %vm537, %v492, 0.0
        %v588 = vsel %vm538, %v494, 0.0
        %v589 = vmax.f32 %v565, %v566
        %v590 = vmax.f32 %v567, %v568
        %v591 = vmax.f32 %v569, %v570
        %v592 = vmax.f32 %v571, %v572
        %v593 = vmax.f32 %v573, %v574
        %v594 = vmax.f32 %v575, %v576
        %v595 = vld [vmem:[#allocation2] sm:$0xff]
        %v596 = vld [vmem:[#allocation2 + $0x8] sm:$0xff]
        %v597 = vld [vmem:[#allocation2 + $0x10] sm:$0xff]
        %v598 = vld [vmem:[#allocation2 + $0x18] sm:$0xff]
        %v599 = vld [vmem:[#allocation2 + $0x20] sm:$0xff]
        %v600 = vld [vmem:[#allocation2 + $0x28] sm:$0xff]
        %v601 = vmax.f32 %v595, %v589
        %v602 = vmax.f32 %v596, %v590
        %v603 = vmax.f32 %v597, %v591
        %v604 = vmax.f32 %v598, %v592
        %v605 = vmax.f32 %v599, %v593
        %v606 = vmax.f32 %v600, %v594
        %v607 = vld [vmem:[#allocation3] sm:$0xff]
        %v608 = vld [vmem:[#allocation3 + $0x8] sm:$0xff]
        %v609 = vld [vmem:[#allocation3 + $0x10] sm:$0xff]
        %v610 = vld [vmem:[#allocation3 + $0x18] sm:$0xff]
        %v611 = vld [vmem:[#allocation3 + $0x20] sm:$0xff]
        %v612 = vld [vmem:[#allocation3 + $0x28] sm:$0xff]
        %v613 = vsub.f32 %v595, %v601
        %v614 = vsub.f32 %v596, %v602
        %v615 = vsub.f32 %v597, %v603
        %v616 = vsub.f32 %v598, %v604
        %v617 = vsub.f32 %v599, %v605
        %v618 = vsub.f32 %v600, %v606
        %v619 = vmul.f32 %v613, 1.442695
        %v620 = vpow.pop %v619
        %v621 = vmul.f32 %v614, 1.442695
        %v622 = vpow.pop %v621
        %v623 = vmul.f32 %v615, 1.442695
        %v624 = vpow.pop %v623
        %v625 = vmul.f32 %v616, 1.442695
        %v626 = vpow.pop %v625
        %v627 = vmul.f32 %v617, 1.442695
        %v628 = vpow.pop %v627
        %v629 = vmul.f32 %v618, 1.442695
        %v630 = vpow.pop %v629
        %v631 = vmul.f32 %v607, %v620
        %v632 = vmul.f32 %v608, %v622
        %v633 = vmul.f32 %v609, %v624
        %v634 = vmul.f32 %v610, %v626
        %v635 = vmul.f32 %v611, %v628
        %v636 = vmul.f32 %v612, %v630
        %v637 = vsub.f32 %v565, %v601
        %v638 = vsub.f32 %v567, %v602
        %v639 = vsub.f32 %v569, %v603
        %v640 = vsub.f32 %v571, %v604
        %v641 = vsub.f32 %v573, %v605
        %v642 = vsub.f32 %v575, %v606
        %v643 = vmul.f32 %v637, 1.442695
        %v644 = vpow.pop %v643
        %v645 = vmul.f32 %v638, 1.442695
        %v646 = vpow.pop %v645
        %v647 = vmul.f32 %v639, 1.442695
        %v648 = vpow.pop %v647
        %v649 = vmul.f32 %v640, 1.442695
        %v650 = vpow.pop %v649
        %v651 = vmul.f32 %v641, 1.442695
        %v652 = vpow.pop %v651
        %v653 = vmul.f32 %v642, 1.442695
        %v654 = vpow.pop %v653
        %v655 = vadd.f32 %v631, %v644
        %v656 = vadd.f32 %v632, %v646
        %v657 = vadd.f32 %v633, %v648
        %v658 = vadd.f32 %v634, %v650
        %v659 = vadd.f32 %v635, %v652
        %v660 = vadd.f32 %v636, %v654
        %v661 = vsub.f32 %v566, %v601
        %v662 = vsub.f32 %v568, %v602
        %v663 = vsub.f32 %v570, %v603
        %v664 = vsub.f32 %v572, %v604
        %v665 = vsub.f32 %v574, %v605
        %v666 = vsub.f32 %v576, %v606
        %v667 = vmul.f32 %v661, 1.442695
        %v668 = vpow.pop %v667
        %v669 = vmul.f32 %v662, 1.442695
        %v670 = vpow.pop %v669
        %v671 = vmul.f32 %v663, 1.442695
        %v672 = vpow.pop %v671
        %v673 = vmul.f32 %v664, 1.442695
        %v674 = vpow.pop %v673
        %v675 = vmul.f32 %v665, 1.442695
        %v676 = vpow.pop %v675
        %v677 = vmul.f32 %v666, 1.442695
        %v678 = vpow.pop %v677
        %v679 = vadd.f32 %v655, %v668
        %v680 = vadd.f32 %v656, %v670
        %v681 = vadd.f32 %v657, %v672
        %v682 = vadd.f32 %v658, %v674
        %v683 = vadd.f32 %v659, %v676
        %v684 = vadd.f32 %v660, %v678
        %685 = vst [vmem:[#allocation3] sm:$0xff] %v679
        %686 = vst [vmem:[#allocation3 + $0x8] sm:$0xff] %v680
        %687 = vst [vmem:[#allocation3 + $0x10] sm:$0xff] %v681
        %688 = vst [vmem:[#allocation3 + $0x18] sm:$0xff] %v682
        %689 = vst [vmem:[#allocation3 + $0x20] sm:$0xff] %v683
        %690 = vst [vmem:[#allocation3 + $0x28] sm:$0xff] %v684
        %691 = vst [vmem:[#allocation2] sm:$0xff] %v601
        %692 = vst [vmem:[#allocation2 + $0x8] sm:$0xff] %v602
        %693 = vst [vmem:[#allocation2 + $0x10] sm:$0xff] %v603
        %694 = vst [vmem:[#allocation2 + $0x18] sm:$0xff] %v604
        %695 = vst [vmem:[#allocation2 + $0x20] sm:$0xff] %v605
        %696 = vst [vmem:[#allocation2 + $0x28] sm:$0xff] %v606
        %v697 = vld [vmem:[#allocation4] sm:$0xff]
        %v698 = vld [vmem:[#allocation4 + $0x8] sm:$0xff]
        %v699 = vld [vmem:[#allocation4 + $0x10] sm:$0xff]
        %v700 = vld [vmem:[#allocation4 + $0x18] sm:$0xff]
        %v701 = vld [vmem:[#allocation4 + $0x20] sm:$0xff]
        %v702 = vld [vmem:[#allocation4 + $0x28] sm:$0xff]
        %v703 = vadd.f32 %v697, %v577
        %v704 = vadd.f32 %v698, %v579
        %v705 = vadd.f32 %v699, %v581
        %v706 = vadd.f32 %v700, %v583
        %v707 = vadd.f32 %v701, %v585
        %v708 = vadd.f32 %v702, %v587
        %v709 = vadd.f32 %v703, %v578
        %v710 = vadd.f32 %v704, %v580
        %v711 = vadd.f32 %v705, %v582
        %v712 = vadd.f32 %v706, %v584
        %v713 = vadd.f32 %v707, %v586
        %v714 = vadd.f32 %v708, %v588
        %715 = vst [vmem:[#allocation4] sm:$0xff] %v709
        %716 = vst [vmem:[#allocation4 + $0x8] sm:$0xff] %v710
        %717 = vst [vmem:[#allocation4 + $0x10] sm:$0xff] %v711
        %718 = vst [vmem:[#allocation4 + $0x18] sm:$0xff] %v712
        %719 = vst [vmem:[#allocation4 + $0x20] sm:$0xff] %v713
        %720 = vst [vmem:[#allocation4 + $0x28] sm:$0xff] %v714
        %p721 = scmp.eq.s32.totalorder %s24, 1
        // Predicated region
        $region41: #{tpu_custom_call.1} parent=31 // pred_check
          %p722 = pneg %p721
        $region42: #{tpu_custom_call.1} parent=31 // pred_check_branch
          %724 = sbr.rel (%p722) target = $region44
        $region43: #{tpu_custom_call.1} parent=31 // pred_region
          %v725 = vld [vmem:[#allocation2] sm:$0xff]
          %v726 = vld [vmem:[#allocation2 + $0x8] sm:$0xff]
          %v727 = vld [vmem:[#allocation2 + $0x10] sm:$0xff]
          %v728 = vld [vmem:[#allocation2 + $0x18] sm:$0xff]
          %v729 = vld [vmem:[#allocation2 + $0x20] sm:$0xff]
          %v730 = vld [vmem:[#allocation2 + $0x28] sm:$0xff]
          %731 = vmax.xlane.f32.xlu0 %v725
          %v732 = vpop.xlane.xlu0 %731
          %733 = vmax.xlane.f32.xlu0 %v726
          %v734 = vpop.xlane.xlu0 %733
          %735 = vmax.xlane.f32.xlu0 %v727
          %v736 = vpop.xlane.xlu0 %735
          %737 = vmax.xlane.f32.xlu0 %v728
          %v738 = vpop.xlane.xlu0 %737
          %739 = vmax.xlane.f32.xlu0 %v729
          %v740 = vpop.xlane.xlu0 %739
          %741 = vmax.xlane.f32.xlu0 %v730
          %v742 = vpop.xlane.xlu0 %741
          %v743 = vld [vmem:[#allocation3] sm:$0xff]
          %v744 = vld [vmem:[#allocation3 + $0x8] sm:$0xff]
          %v745 = vld [vmem:[#allocation3 + $0x10] sm:$0xff]
          %v746 = vld [vmem:[#allocation3 + $0x18] sm:$0xff]
          %v747 = vld [vmem:[#allocation3 + $0x20] sm:$0xff]
          %v748 = vld [vmem:[#allocation3 + $0x28] sm:$0xff]
          %v749 = vsub.f32 %v725, %v732
          %v750 = vsub.f32 %v726, %v734
          %v751 = vsub.f32 %v727, %v736
          %v752 = vsub.f32 %v728, %v738
          %v753 = vsub.f32 %v729, %v740
          %v754 = vsub.f32 %v730, %v742
          %v755 = vmul.f32 %v749, 1.442695
          %v756 = vpow.pop %v755
          %v757 = vmul.f32 %v750, 1.442695
          %v758 = vpow.pop %v757
          %v759 = vmul.f32 %v751, 1.442695
          %v760 = vpow.pop %v759
          %v761 = vmul.f32 %v752, 1.442695
          %v762 = vpow.pop %v761
          %v763 = vmul.f32 %v753, 1.442695
          %v764 = vpow.pop %v763
          %v765 = vmul.f32 %v754, 1.442695
          %v766 = vpow.pop %v765
          %v767 = vmul.f32 %v743, %v756
          %v768 = vmul.f32 %v744, %v758
          %v769 = vmul.f32 %v745, %v760
          %v770 = vmul.f32 %v746, %v762
          %v771 = vmul.f32 %v747, %v764
          %v772 = vmul.f32 %v748, %v766
          %773 = vadd.xlane.f32.xlu0 %v767
          %v774 = vpop.xlane.xlu0 %773
          %775 = vadd.xlane.f32.xlu0 %v768
          %v776 = vpop.xlane.xlu0 %775
          %777 = vadd.xlane.f32.xlu0 %v769
          %v778 = vpop.xlane.xlu0 %777
          %779 = vadd.xlane.f32.xlu0 %v770
          %v780 = vpop.xlane.xlu0 %779
          %781 = vadd.xlane.f32.xlu0 %v771
          %v782 = vpop.xlane.xlu0 %781
          %783 = vadd.xlane.f32.xlu0 %v772
          %v784 = vpop.xlane.xlu0 %783
          %v785 = vlog2.pop %v774
          %v786 = vmul.f32 %v785, 0.6931472
          %v787 = vlog2.pop %v776
          %v788 = vmul.f32 %v787, 0.6931472
          %v789 = vlog2.pop %v778
          %v790 = vmul.f32 %v789, 0.6931472
          %v791 = vlog2.pop %v780
          %v792 = vmul.f32 %v791, 0.6931472
          %v793 = vlog2.pop %v782
          %v794 = vmul.f32 %v793, 0.6931472
          %v795 = vlog2.pop %v784
          %v796 = vmul.f32 %v795, 0.6931472
          %v797 = vadd.f32 %v732, %v786
          %v798 = vadd.f32 %v734, %v788
          %v799 = vadd.f32 %v736, %v790
          %v800 = vadd.f32 %v738, %v792
          %v801 = vadd.f32 %v740, %v794
          %v802 = vadd.f32 %v742, %v796
          %vm803 = vcmask 7168
          %804 = vst.msk [vmem:[%s282] sm:$0xff] %vm803, %v797
          %805 = vst.msk [vmem:[%s282 + $0x8] sm:$0xff] %vm803, %v798
          %806 = vst.msk [vmem:[%s282 + $0x10] sm:$0xff] %vm803, %v799
          %807 = vst.msk [vmem:[%s282 + $0x18] sm:$0xff] %vm803, %v800
          %808 = vst.msk [vmem:[%s282 + $0x20] sm:$0xff] %vm803, %v801
          %809 = vst.msk [vmem:[%s282 + $0x28] sm:$0xff] %vm803, %v802
          %v810 = vld [vmem:[#allocation4] sm:$0xff]
          %v811 = vld [vmem:[#allocation4 + $0x8] sm:$0xff]
          %v812 = vld [vmem:[#allocation4 + $0x10] sm:$0xff]
          %v813 = vld [vmem:[#allocation4 + $0x18] sm:$0xff]
          %v814 = vld [vmem:[#allocation4 + $0x20] sm:$0xff]
          %v815 = vld [vmem:[#allocation4 + $0x28] sm:$0xff]
          %816 = vadd.xlane.f32.xlu0 %v810
          %v817 = vpop.xlane.xlu0 %816
          %818 = vadd.xlane.f32.xlu0 %v811
          %v819 = vpop.xlane.xlu0 %818
          %820 = vadd.xlane.f32.xlu0 %v812
          %v821 = vpop.xlane.xlu0 %820
          %822 = vadd.xlane.f32.xlu0 %v813
          %v823 = vpop.xlane.xlu0 %822
          %824 = vadd.xlane.f32.xlu0 %v814
          %v825 = vpop.xlane.xlu0 %824
          %826 = vadd.xlane.f32.xlu0 %v815
          %v827 = vpop.xlane.xlu0 %826
          %828 = vst.msk [vmem:[%s288] sm:$0xff] %vm803, %v817
          %829 = vst.msk [vmem:[%s288 + $0x8] sm:$0xff] %vm803, %v819
          %830 = vst.msk [vmem:[%s288 + $0x10] sm:$0xff] %vm803, %v821
          %831 = vst.msk [vmem:[%s288 + $0x18] sm:$0xff] %vm803, %v823
          %832 = vst.msk [vmem:[%s288 + $0x20] sm:$0xff] %vm803, %v825
          %833 = vst.msk [vmem:[%s288 + $0x28] sm:$0xff] %vm803, %v827
        $region44: #{tpu_custom_call.1} parent=31 // pred_fallthru
          _
        %s834 = smul.u32 6, %s23
        %p835 = scmp.lt.s32.totalorder %s834, 5
        %s836 = scalar_select %p835, %s834, 5
        %s837 = smul.addr %s836, 8
        %s838 = scalar_lea.vmem %s3, %s837
        %s839 = smul.u32 6, %s23
        %p840 = scmp.lt.s32.totalorder %s839, 5
        %s841 = scalar_select %p840, %s839, 5
        %s842 = smul.addr %s841, 8
        %s843 = scalar_lea.vmem %s4, %s842
        // Predicated region
        $region45: #{tpu_custom_call.1} parent=31 // pred_check
          %p844 = pneg %p127
        $region46: #{tpu_custom_call.1} parent=31 // pred_check_branch
          %846 = sbr.rel (%p844) target = $region48
        $region47: #{tpu_custom_call.1} parent=31 // pred_region
          %s847 = smul.u32 6, %s23
        $region48: #{tpu_custom_call.1} parent=31 // pred_fallthru
          _
        // Predicated region
        $region49: #{tpu_custom_call.1} parent=31 // pred_check
          %p848 = pneg %p153
        $region50: #{tpu_custom_call.1} parent=31 // pred_check_branch
          %850 = sbr.rel (%p848) target = $region52
        $region51: #{tpu_custom_call.1} parent=31 // pred_region
          %s851 = smul.u32 6, %s23
        $region52: #{tpu_custom_call.1} parent=31 // pred_fallthru
          _
        // Predicated region
        $region53: #{tpu_custom_call.1} parent=31 // pred_check
          %p852 = pneg %p127
        $region54: #{tpu_custom_call.1} parent=31 // pred_check_branch
          %854 = sbr.rel (%p852) target = $region56
        $region55: #{tpu_custom_call.1} parent=31 // pred_region
          %s855 = smul.u32 6, %s23
          %p856 = scmp.lt.s32.totalorder %s855, 5
          %s857 = scalar_select %p856, %s855, 5
          %s858 = smul.addr %s857, 8
          %s859 = scalar_lea.vmem %s3, %s858
        $region56: #{tpu_custom_call.1} parent=31 // pred_fallthru
          _
        // Predicated region
        $region57: #{tpu_custom_call.1} parent=31 // pred_check
          %p860 = pneg %p153
        $region58: #{tpu_custom_call.1} parent=31 // pred_check_branch
          %862 = sbr.rel (%p860) target = $region60
        $region59: #{tpu_custom_call.1} parent=31 // pred_region
          %s863 = smul.u32 6, %s23
          %p864 = scmp.lt.s32.totalorder %s863, 5
          %s865 = scalar_select %p864, %s863, 5
          %s866 = smul.addr %s865, 8
          %s867 = scalar_lea.vmem %s4, %s866
        $region60: #{tpu_custom_call.1} parent=31 // pred_fallthru
          _
      $region32: #{tpu_custom_call.1} parent=5 // pred_fallthru
        _
      %p868 = scmp.le.s32.totalorder 2, %s14
      // Predicated region
      $region61: #{tpu_custom_call.1} parent=5 // pred_check
        %p869 = pneg %p868
      $region62: #{tpu_custom_call.1} parent=5 // pred_check_branch
        %871 = sbr.rel (%p869) target = $region64
      $region63: #{tpu_custom_call.1} parent=5 // pred_region
        %s872 = ssub.s32 %s14, 2
      $region64: #{tpu_custom_call.1} parent=5 // pred_fallthru
        _
    $region6: #{tpu_custom_call.1} parent=1 // loop_footer
      %s18 = sadd.s32 1, %s14
    $region7: #{tpu_custom_call.1} parent=1 // loop_footer_branch
      %13 = sbr.rel target = $region3
    $region8: #{tpu_custom_call.1} parent=1 // loop_exit
      _
    %873 = vsyncpa [#allocation6], 1
    %s874 = scalar_lea.sflag [#allocation6], 1
    %875 = vsyncpa %s874, 1

</llo_original>
